<compile_context>
chip_gen: v7x
topology: tpu7x:2x2x1
jax: 0.10.0
libtpu: 0.0.40
codegen_flags: <defaults>
</compile_context>

<pallas_src>
import numpy as np
import jax
import jax.numpy as jnp
from jax.experimental import pallas as pl
from jax.experimental.pallas import tpu as pltpu


def lstm_last_linear_kernel(x_ref, p_ref, out_ref):
    """Full LSTM recurrence + final Linear, fused.

    x_ref  : (bb, T)    inputs (input_size == 1, squeezed), one VMEM tile
    p_ref  : (H+3, 4H)  packed parameter slab:
               rows 0..H-1 : whh  (gates = h @ whh), i/f/o cols pre-scaled 0.5
               row  H      : wih  (input->gates),    i/f/o cols pre-scaled 0.5
               row  H+1    : bias (b_ih + b_hh),     i/f/o cols pre-scaled 0.5
               row  H+2    : [w_linear (H lanes) | b_linear (1 lane) | 0 pad]
    out_ref: (bb, 1)    Linear(h_T)
    """
    bb, T = x_ref.shape
    H = p_ref.shape[0] - 3

    # Parameters loaded once, resident across the whole unrolled loop.
    whh = p_ref[0:H, :]                   # (H, 4H)
    wih = p_ref[H:H + 1, :]               # (1, 4H)
    bias = p_ref[H + 1:H + 2, :]          # (1, 4H)
    wl = p_ref[H + 2:H + 3, 0:H]          # (1, H)
    bl = p_ref[H + 2:H + 3, H:H + 1]      # (1, 1)

    h = jnp.zeros((bb, H), jnp.float32)
    c = jnp.zeros((bb, H), jnp.float32)

    # T is small & static: full Python unroll -> static lane slices and
    # cross-step scheduling visibility.  (Switch to lax.fori_loop(unroll=k)
    # if T ever grows large.)
    for t in range(T):
        # Input projection + bias: independent of h/c -> off the serial chain.
        pre_t = x_ref[:, t:t + 1] * wih + bias                        # (bb, 4H)
        # Single fused MXU matmul per step.
        gates = pre_t + jnp.dot(h, whh,
                                preferred_element_type=jnp.float32)   # (bb, 4H)
        # ONE full-width EUP pass; i/f/o columns carry z/2 (pre-scaled), so
        # sigmoid(z) = 0.5*tanh(z/2) + 0.5; the g column is plain tanh(z).
        th = jnp.tanh(gates)
        i_g = 0.5 * th[:, 0 * H:1 * H] + 0.5
        f_g = 0.5 * th[:, 1 * H:2 * H] + 0.5
        g_g = th[:, 2 * H:3 * H]
        o_g = 0.5 * th[:, 3 * H:4 * H] + 0.5
        c = f_g * c + i_g * g_g
        h = o_g * jnp.tanh(c)

    # Final Linear folded into the epilogue: lane reduction over H (XLU),
    # then a 1-lane store.
    out_ref[...] = jnp.sum(h * wl, axis=-1, keepdims=True) + bl


def prepare_params(w_ih, w_hh, b_ih, b_hh, w_lin, b_lin):
    """One-time repack of PyTorch-style LSTM/Linear params into one slab.

    PyTorch gate order (i, f, g, o) is preserved along the 4H axis; the
    i/f/o columns of wih/whh/bias are pre-scaled by 0.5 so the kernel needs
    only a single tanh pass per timestep (sigmoid(z) = 0.5*tanh(z/2) + 0.5).
    """
    H = w_hh.shape[1]
    wih = jnp.asarray(w_ih, jnp.float32).reshape(1, 4 * H)   # (4H,1) -> (1,4H)
    whh = jnp.asarray(w_hh, jnp.float32).T                   # (4H,H) -> (H,4H)
    bias = (jnp.asarray(b_ih, jnp.float32)
            + jnp.asarray(b_hh, jnp.float32)).reshape(1, 4 * H)

    half = jnp.full((1, H), 0.5, jnp.float32)
    one = jnp.ones((1, H), jnp.float32)
    scale = jnp.concatenate([half, half, one, half], axis=1)  # i, f, g, o
    wih = wih * scale
    whh = whh * scale
    bias = bias * scale

    lin_row = jnp.zeros((1, 4 * H), jnp.float32)
    lin_row = lin_row.at[:, 0:H].set(jnp.asarray(w_lin, jnp.float32).reshape(1, H))
    lin_row = lin_row.at[:, H:H + 1].set(jnp.asarray(b_lin, jnp.float32).reshape(1, 1))

    return jnp.concatenate([whh, wih, bias, lin_row], axis=0)  # (H+3, 4H)


@jax.jit
def simple_model_forward(x, params):
    """x: (B, T, 1) float32, PyTorch batch_first layout. Returns (B, 1)."""
    B, T, I = x.shape
    assert I == 1
    x_2d = x.reshape(B, T)            # lane-friendly single-tile layout
    Hp3, fourH = params.shape

    # Batch-parallel grid (uses v7x's 2nd TensorCore once B grows); at B<=8
    # this is a single grid step, i.e. effectively no extra overhead.
    bb = B if B <= 8 else 8
    grid = (pl.cdiv(B, bb),)

    return pl.pallas_call(
        lstm_last_linear_kernel,
        out_shape=jax.ShapeDtypeStruct((B, 1), jnp.float32),
        grid=grid,
        in_specs=[
            pl.BlockSpec((bb, T), lambda i: (i, 0)),
            pl.BlockSpec((Hp3, fourH), lambda i: (0, 0)),   # grid-invariant
        ],
        out_specs=pl.BlockSpec((bb, 1), lambda i: (i, 0)),
        compiler_params=pltpu.CompilerParams(
            dimension_semantics=("parallel",)),
    )(x_2d, params)


def reference_forward(x, w_ih, w_hh, b_ih, b_hh, w_lin, b_lin):
    """Pure-JAX reference matching torch.nn.LSTM + Linear semantics."""
    B, T, _ = x.shape
    H = w_hh.shape[1]
    h = jnp.zeros((B, H), jnp.float32)
    c = jnp.zeros((B, H), jnp.float32)
    for t in range(T):
        x_t = x[:, t, :]                                 # (B, 1)
        gates = x_t @ w_ih.T + h @ w_hh.T + b_ih + b_hh  # (B, 4H)
        i_g = jax.nn.sigmoid(gates[:, 0 * H:1 * H])
        f_g = jax.nn.sigmoid(gates[:, 1 * H:2 * H])
        g_g = jnp.tanh(gates[:, 2 * H:3 * H])
        o_g = jax.nn.sigmoid(gates[:, 3 * H:4 * H])
        c = f_g * c + i_g * g_g
        h = o_g * jnp.tanh(c)
    return h @ w_lin.T + b_lin


if __name__ == "__main__":
    B, T, I, H = 2, 8, 1, 16

    key = jax.random.PRNGKey(0)
    keys = jax.random.split(key, 7)
    bound = 1.0 / np.sqrt(H)     # PyTorch default init range for LSTM/Linear

    x = jax.random.normal(keys[0], (B, T, I), dtype=jnp.float32)
    w_ih = jax.random.uniform(keys[1], (4 * H, I), jnp.float32, -bound, bound)
    w_hh = jax.random.uniform(keys[2], (4 * H, H), jnp.float32, -bound, bound)
    b_ih = jax.random.uniform(keys[3], (4 * H,), jnp.float32, -bound, bound)
    b_hh = jax.random.uniform(keys[4], (4 * H,), jnp.float32, -bound, bound)
    w_lin = jax.random.uniform(keys[5], (1, H), jnp.float32, -bound, bound)
    b_lin = jax.random.uniform(keys[6], (1,), jnp.float32, -bound, bound)

    # One-time parameter repack (outside the per-call hot path).
    params = prepare_params(w_ih, w_hh, b_ih, b_hh, w_lin, b_lin)
    params = jax.block_until_ready(params)

    out = simple_model_forward(x, params)
    out = jax.block_until_ready(out)

    ref = reference_forward(x, w_ih, w_hh, b_ih, b_hh, w_lin, b_lin)
    assert out.shape == (B, 1)
    assert np.allclose(np.asarray(out), np.asarray(ref), atol=1e-5, rtol=1e-5)

    print("KERNEL_OK")
</pallas_src>

<mosaic_0001>
module attributes {stable_mosaic.version = 11 : i64} {
  func.func @lstm_last_linear_kernel(%arg0: i32, %arg1: memref<2x8xf32, #tpu.memory_space<vmem>>, %arg2: memref<19x64xf32, #tpu.memory_space<vmem>>, %arg3: memref<2x1xf32, #tpu.memory_space<vmem>>) attributes {dimension_semantics = [#tpu.dimension_semantics<parallel>], iteration_bounds = array<i64: 1>, scalar_prefetch = 0 : i64, scratch_operands = 0 : i64, tpu.core_type = #tpu.core_type<tc>, window_params = [{transform_indices = @transform_0, window_bounds = array<i64: 2, 8>}, {pipeline_mode = #tpu.pipeline_mode<synchronous>, transform_indices = @transform_1, window_bounds = array<i64: 19, 64>}, {transform_indices = @transform_2, window_bounds = array<i64: 2, 1>}]} {
    %c0 = arith.constant 0 : index
    %c0_0 = arith.constant 0 : index
    %0 = vector.load %arg2[%c0, %c0_0] : memref<19x64xf32, #tpu.memory_space<vmem>>, vector<16x64xf32>
    %c16 = arith.constant 16 : index
    %c0_1 = arith.constant 0 : index
    %1 = vector.load %arg2[%c16, %c0_1] : memref<19x64xf32, #tpu.memory_space<vmem>>, vector<1x64xf32>
    %c17 = arith.constant 17 : index
    %c0_2 = arith.constant 0 : index
    %2 = vector.load %arg2[%c17, %c0_2] : memref<19x64xf32, #tpu.memory_space<vmem>>, vector<1x64xf32>
    %c18 = arith.constant 18 : index
    %c0_3 = arith.constant 0 : index
    %3 = vector.load %arg2[%c18, %c0_3] : memref<19x64xf32, #tpu.memory_space<vmem>>, vector<1x16xf32>
    %c18_4 = arith.constant 18 : index
    %c16_5 = arith.constant 16 : index
    %4 = vector.load %arg2[%c18_4, %c16_5] : memref<19x64xf32, #tpu.memory_space<vmem>>, vector<1x1xf32>
    %cst = arith.constant 0.000000e+00 : f32
    %5 = vector.broadcast %cst : f32 to vector<2x16xf32>
    %cst_6 = arith.constant 0.000000e+00 : f32
    %6 = vector.broadcast %cst_6 : f32 to vector<2x16xf32>
    %c0_7 = arith.constant 0 : index
    %c0_8 = arith.constant 0 : index
    %7 = vector.load %arg1[%c0_7, %c0_8] : memref<2x8xf32, #tpu.memory_space<vmem>>, vector<2x1xf32>
    %8 = vector.broadcast %7 : vector<2x1xf32> to vector<2x64xf32>
    %9 = vector.broadcast %1 : vector<1x64xf32> to vector<2x64xf32>
    %10 = arith.mulf %8, %9 : vector<2x64xf32>
    %11 = vector.broadcast %2 : vector<1x64xf32> to vector<2x64xf32>
    %12 = arith.addf %10, %11 : vector<2x64xf32>
    %cst_9 = arith.constant dense<0.000000e+00> : vector<2x64xf32>
    %13 = tpu.matmul %5, %0, %cst_9 {dimension_numbers = #tpu.dot_dimension_numbers<[1], [0], [0], [1], [0, 0, 1, 1], [], []>} : vector<2x16xf32>, vector<16x64xf32>, vector<2x64xf32> -> vector<2x64xf32>
    %14 = arith.addf %12, %13 : vector<2x64xf32>
    %15 = math.tanh %14 : vector<2x64xf32>
    %16 = vector.extract_strided_slice %15 {offsets = [0, 0], sizes = [2, 16], strides = [1, 1]} : vector<2x64xf32> to vector<2x16xf32>
    %cst_10 = arith.constant 5.000000e-01 : f32
    %17 = vector.broadcast %cst_10 : f32 to vector<2x16xf32>
    %18 = arith.mulf %17, %16 : vector<2x16xf32>
    %cst_11 = arith.constant 5.000000e-01 : f32
    %19 = vector.broadcast %cst_11 : f32 to vector<2x16xf32>
    %20 = arith.addf %18, %19 : vector<2x16xf32>
    %21 = vector.extract_strided_slice %15 {offsets = [0, 16], sizes = [2, 16], strides = [1, 1]} : vector<2x64xf32> to vector<2x16xf32>
    %cst_12 = arith.constant 5.000000e-01 : f32
    %22 = vector.broadcast %cst_12 : f32 to vector<2x16xf32>
    %23 = arith.mulf %22, %21 : vector<2x16xf32>
    %cst_13 = arith.constant 5.000000e-01 : f32
    %24 = vector.broadcast %cst_13 : f32 to vector<2x16xf32>
    %25 = arith.addf %23, %24 : vector<2x16xf32>
    %26 = vector.extract_strided_slice %15 {offsets = [0, 32], sizes = [2, 16], strides = [1, 1]} : vector<2x64xf32> to vector<2x16xf32>
    %27 = vector.extract_strided_slice %15 {offsets = [0, 48], sizes = [2, 16], strides = [1, 1]} : vector<2x64xf32> to vector<2x16xf32>
    %cst_14 = arith.constant 5.000000e-01 : f32
    %28 = vector.broadcast %cst_14 : f32 to vector<2x16xf32>
    %29 = arith.mulf %28, %27 : vector<2x16xf32>
    %cst_15 = arith.constant 5.000000e-01 : f32
    %30 = vector.broadcast %cst_15 : f32 to vector<2x16xf32>
    %31 = arith.addf %29, %30 : vector<2x16xf32>
    %32 = arith.mulf %25, %6 : vector<2x16xf32>
    %33 = arith.mulf %20, %26 : vector<2x16xf32>
    %34 = arith.addf %32, %33 : vector<2x16xf32>
    %35 = math.tanh %34 : vector<2x16xf32>
    %36 = arith.mulf %31, %35 : vector<2x16xf32>
    %c0_16 = arith.constant 0 : index
    %c1 = arith.constant 1 : index
    %37 = vector.load %arg1[%c0_16, %c1] : memref<2x8xf32, #tpu.memory_space<vmem>>, vector<2x1xf32>
    %38 = vector.broadcast %37 : vector<2x1xf32> to vector<2x64xf32>
    %39 = vector.broadcast %1 : vector<1x64xf32> to vector<2x64xf32>
    %40 = arith.mulf %38, %39 : vector<2x64xf32>
    %41 = vector.broadcast %2 : vector<1x64xf32> to vector<2x64xf32>
    %42 = arith.addf %40, %41 : vector<2x64xf32>
    %cst_17 = arith.constant dense<0.000000e+00> : vector<2x64xf32>
    %43 = tpu.matmul %36, %0, %cst_17 {dimension_numbers = #tpu.dot_dimension_numbers<[1], [0], [0], [1], [0, 0, 1, 1], [], []>} : vector<2x16xf32>, vector<16x64xf32>, vector<2x64xf32> -> vector<2x64xf32>
    %44 = arith.addf %42, %43 : vector<2x64xf32>
    %45 = math.tanh %44 : vector<2x64xf32>
    %46 = vector.extract_strided_slice %45 {offsets = [0, 0], sizes = [2, 16], strides = [1, 1]} : vector<2x64xf32> to vector<2x16xf32>
    %cst_18 = arith.constant 5.000000e-01 : f32
    %47 = vector.broadcast %cst_18 : f32 to vector<2x16xf32>
    %48 = arith.mulf %47, %46 : vector<2x16xf32>
    %cst_19 = arith.constant 5.000000e-01 : f32
    %49 = vector.broadcast %cst_19 : f32 to vector<2x16xf32>
    %50 = arith.addf %48, %49 : vector<2x16xf32>
    %51 = vector.extract_strided_slice %45 {offsets = [0, 16], sizes = [2, 16], strides = [1, 1]} : vector<2x64xf32> to vector<2x16xf32>
    %cst_20 = arith.constant 5.000000e-01 : f32
    %52 = vector.broadcast %cst_20 : f32 to vector<2x16xf32>
    %53 = arith.mulf %52, %51 : vector<2x16xf32>
    %cst_21 = arith.constant 5.000000e-01 : f32
    %54 = vector.broadcast %cst_21 : f32 to vector<2x16xf32>
    %55 = arith.addf %53, %54 : vector<2x16xf32>
    %56 = vector.extract_strided_slice %45 {offsets = [0, 32], sizes = [2, 16], strides = [1, 1]} : vector<2x64xf32> to vector<2x16xf32>
    %57 = vector.extract_strided_slice %45 {offsets = [0, 48], sizes = [2, 16], strides = [1, 1]} : vector<2x64xf32> to vector<2x16xf32>
    %cst_22 = arith.constant 5.000000e-01 : f32
    %58 = vector.broadcast %cst_22 : f32 to vector<2x16xf32>
    %59 = arith.mulf %58, %57 : vector<2x16xf32>
    %cst_23 = arith.constant 5.000000e-01 : f32
    %60 = vector.broadcast %cst_23 : f32 to vector<2x16xf32>
    %61 = arith.addf %59, %60 : vector<2x16xf32>
    %62 = arith.mulf %55, %34 : vector<2x16xf32>
    %63 = arith.mulf %50, %56 : vector<2x16xf32>
    %64 = arith.addf %62, %63 : vector<2x16xf32>
    %65 = math.tanh %64 : vector<2x16xf32>
    %66 = arith.mulf %61, %65 : vector<2x16xf32>
    %c0_24 = arith.constant 0 : index
    %c2 = arith.constant 2 : index
    %67 = vector.load %arg1[%c0_24, %c2] : memref<2x8xf32, #tpu.memory_space<vmem>>, vector<2x1xf32>
    %68 = vector.broadcast %67 : vector<2x1xf32> to vector<2x64xf32>
    %69 = vector.broadcast %1 : vector<1x64xf32> to vector<2x64xf32>
    %70 = arith.mulf %68, %69 : vector<2x64xf32>
    %71 = vector.broadcast %2 : vector<1x64xf32> to vector<2x64xf32>
    %72 = arith.addf %70, %71 : vector<2x64xf32>
    %cst_25 = arith.constant dense<0.000000e+00> : vector<2x64xf32>
    %73 = tpu.matmul %66, %0, %cst_25 {dimension_numbers = #tpu.dot_dimension_numbers<[1], [0], [0], [1], [0, 0, 1, 1], [], []>} : vector<2x16xf32>, vector<16x64xf32>, vector<2x64xf32> -> vector<2x64xf32>
    %74 = arith.addf %72, %73 : vector<2x64xf32>
    %75 = math.tanh %74 : vector<2x64xf32>
    %76 = vector.extract_strided_slice %75 {offsets = [0, 0], sizes = [2, 16], strides = [1, 1]} : vector<2x64xf32> to vector<2x16xf32>
    %cst_26 = arith.constant 5.000000e-01 : f32
    %77 = vector.broadcast %cst_26 : f32 to vector<2x16xf32>
    %78 = arith.mulf %77, %76 : vector<2x16xf32>
    %cst_27 = arith.constant 5.000000e-01 : f32
    %79 = vector.broadcast %cst_27 : f32 to vector<2x16xf32>
    %80 = arith.addf %78, %79 : vector<2x16xf32>
    %81 = vector.extract_strided_slice %75 {offsets = [0, 16], sizes = [2, 16], strides = [1, 1]} : vector<2x64xf32> to vector<2x16xf32>
    %cst_28 = arith.constant 5.000000e-01 : f32
    %82 = vector.broadcast %cst_28 : f32 to vector<2x16xf32>
    %83 = arith.mulf %82, %81 : vector<2x16xf32>
    %cst_29 = arith.constant 5.000000e-01 : f32
    %84 = vector.broadcast %cst_29 : f32 to vector<2x16xf32>
    %85 = arith.addf %83, %84 : vector<2x16xf32>
    %86 = vector.extract_strided_slice %75 {offsets = [0, 32], sizes = [2, 16], strides = [1, 1]} : vector<2x64xf32> to vector<2x16xf32>
    %87 = vector.extract_strided_slice %75 {offsets = [0, 48], sizes = [2, 16], strides = [1, 1]} : vector<2x64xf32> to vector<2x16xf32>
    %cst_30 = arith.constant 5.000000e-01 : f32
    %88 = vector.broadcast %cst_30 : f32 to vector<2x16xf32>
    %89 = arith.mulf %88, %87 : vector<2x16xf32>
    %cst_31 = arith.constant 5.000000e-01 : f32
    %90 = vector.broadcast %cst_31 : f32 to vector<2x16xf32>
    %91 = arith.addf %89, %90 : vector<2x16xf32>
    %92 = arith.mulf %85, %64 : vector<2x16xf32>
    %93 = arith.mulf %80, %86 : vector<2x16xf32>
    %94 = arith.addf %92, %93 : vector<2x16xf32>
    %95 = math.tanh %94 : vector<2x16xf32>
    %96 = arith.mulf %91, %95 : vector<2x16xf32>
    %c0_32 = arith.constant 0 : index
    %c3 = arith.constant 3 : index
    %97 = vector.load %arg1[%c0_32, %c3] : memref<2x8xf32, #tpu.memory_space<vmem>>, vector<2x1xf32>
    %98 = vector.broadcast %97 : vector<2x1xf32> to vector<2x64xf32>
    %99 = vector.broadcast %1 : vector<1x64xf32> to vector<2x64xf32>
    %100 = arith.mulf %98, %99 : vector<2x64xf32>
    %101 = vector.broadcast %2 : vector<1x64xf32> to vector<2x64xf32>
    %102 = arith.addf %100, %101 : vector<2x64xf32>
    %cst_33 = arith.constant dense<0.000000e+00> : vector<2x64xf32>
    %103 = tpu.matmul %96, %0, %cst_33 {dimension_numbers = #tpu.dot_dimension_numbers<[1], [0], [0], [1], [0, 0, 1, 1], [], []>} : vector<2x16xf32>, vector<16x64xf32>, vector<2x64xf32> -> vector<2x64xf32>
    %104 = arith.addf %102, %103 : vector<2x64xf32>
    %105 = math.tanh %104 : vector<2x64xf32>
    %106 = vector.extract_strided_slice %105 {offsets = [0, 0], sizes = [2, 16], strides = [1, 1]} : vector<2x64xf32> to vector<2x16xf32>
    %cst_34 = arith.constant 5.000000e-01 : f32
    %107 = vector.broadcast %cst_34 : f32 to vector<2x16xf32>
    %108 = arith.mulf %107, %106 : vector<2x16xf32>
    %cst_35 = arith.constant 5.000000e-01 : f32
    %109 = vector.broadcast %cst_35 : f32 to vector<2x16xf32>
    %110 = arith.addf %108, %109 : vector<2x16xf32>
    %111 = vector.extract_strided_slice %105 {offsets = [0, 16], sizes = [2, 16], strides = [1, 1]} : vector<2x64xf32> to vector<2x16xf32>
    %cst_36 = arith.constant 5.000000e-01 : f32
    %112 = vector.broadcast %cst_36 : f32 to vector<2x16xf32>
    %113 = arith.mulf %112, %111 : vector<2x16xf32>
    %cst_37 = arith.constant 5.000000e-01 : f32
    %114 = vector.broadcast %cst_37 : f32 to vector<2x16xf32>
    %115 = arith.addf %113, %114 : vector<2x16xf32>
    %116 = vector.extract_strided_slice %105 {offsets = [0, 32], sizes = [2, 16], strides = [1, 1]} : vector<2x64xf32> to vector<2x16xf32>
    %117 = vector.extract_strided_slice %105 {offsets = [0, 48], sizes = [2, 16], strides = [1, 1]} : vector<2x64xf32> to vector<2x16xf32>
    %cst_38 = arith.constant 5.000000e-01 : f32
    %118 = vector.broadcast %cst_38 : f32 to vector<2x16xf32>
    %119 = arith.mulf %118, %117 : vector<2x16xf32>
    %cst_39 = arith.constant 5.000000e-01 : f32
    %120 = vector.broadcast %cst_39 : f32 to vector<2x16xf32>
    %121 = arith.addf %119, %120 : vector<2x16xf32>
    %122 = arith.mulf %115, %94 : vector<2x16xf32>
    %123 = arith.mulf %110, %116 : vector<2x16xf32>
    %124 = arith.addf %122, %123 : vector<2x16xf32>
    %125 = math.tanh %124 : vector<2x16xf32>
    %126 = arith.mulf %121, %125 : vector<2x16xf32>
    %c0_40 = arith.constant 0 : index
    %c4 = arith.constant 4 : index
    %127 = vector.load %arg1[%c0_40, %c4] : memref<2x8xf32, #tpu.memory_space<vmem>>, vector<2x1xf32>
    %128 = vector.broadcast %127 : vector<2x1xf32> to vector<2x64xf32>
    %129 = vector.broadcast %1 : vector<1x64xf32> to vector<2x64xf32>
    %130 = arith.mulf %128, %129 : vector<2x64xf32>
    %131 = vector.broadcast %2 : vector<1x64xf32> to vector<2x64xf32>
    %132 = arith.addf %130, %131 : vector<2x64xf32>
    %cst_41 = arith.constant dense<0.000000e+00> : vector<2x64xf32>
    %133 = tpu.matmul %126, %0, %cst_41 {dimension_numbers = #tpu.dot_dimension_numbers<[1], [0], [0], [1], [0, 0, 1, 1], [], []>} : vector<2x16xf32>, vector<16x64xf32>, vector<2x64xf32> -> vector<2x64xf32>
    %134 = arith.addf %132, %133 : vector<2x64xf32>
    %135 = math.tanh %134 : vector<2x64xf32>
    %136 = vector.extract_strided_slice %135 {offsets = [0, 0], sizes = [2, 16], strides = [1, 1]} : vector<2x64xf32> to vector<2x16xf32>
    %cst_42 = arith.constant 5.000000e-01 : f32
    %137 = vector.broadcast %cst_42 : f32 to vector<2x16xf32>
    %138 = arith.mulf %137, %136 : vector<2x16xf32>
    %cst_43 = arith.constant 5.000000e-01 : f32
    %139 = vector.broadcast %cst_43 : f32 to vector<2x16xf32>
    %140 = arith.addf %138, %139 : vector<2x16xf32>
    %141 = vector.extract_strided_slice %135 {offsets = [0, 16], sizes = [2, 16], strides = [1, 1]} : vector<2x64xf32> to vector<2x16xf32>
    %cst_44 = arith.constant 5.000000e-01 : f32
    %142 = vector.broadcast %cst_44 : f32 to vector<2x16xf32>
    %143 = arith.mulf %142, %141 : vector<2x16xf32>
    %cst_45 = arith.constant 5.000000e-01 : f32
    %144 = vector.broadcast %cst_45 : f32 to vector<2x16xf32>
    %145 = arith.addf %143, %144 : vector<2x16xf32>
    %146 = vector.extract_strided_slice %135 {offsets = [0, 32], sizes = [2, 16], strides = [1, 1]} : vector<2x64xf32> to vector<2x16xf32>
    %147 = vector.extract_strided_slice %135 {offsets = [0, 48], sizes = [2, 16], strides = [1, 1]} : vector<2x64xf32> to vector<2x16xf32>
    %cst_46 = arith.constant 5.000000e-01 : f32
    %148 = vector.broadcast %cst_46 : f32 to vector<2x16xf32>
    %149 = arith.mulf %148, %147 : vector<2x16xf32>
    %cst_47 = arith.constant 5.000000e-01 : f32
    %150 = vector.broadcast %cst_47 : f32 to vector<2x16xf32>
    %151 = arith.addf %149, %150 : vector<2x16xf32>
    %152 = arith.mulf %145, %124 : vector<2x16xf32>
    %153 = arith.mulf %140, %146 : vector<2x16xf32>
    %154 = arith.addf %152, %153 : vector<2x16xf32>
    %155 = math.tanh %154 : vector<2x16xf32>
    %156 = arith.mulf %151, %155 : vector<2x16xf32>
    %c0_48 = arith.constant 0 : index
    %c5 = arith.constant 5 : index
    %157 = vector.load %arg1[%c0_48, %c5] : memref<2x8xf32, #tpu.memory_space<vmem>>, vector<2x1xf32>
    %158 = vector.broadcast %157 : vector<2x1xf32> to vector<2x64xf32>
    %159 = vector.broadcast %1 : vector<1x64xf32> to vector<2x64xf32>
    %160 = arith.mulf %158, %159 : vector<2x64xf32>
    %161 = vector.broadcast %2 : vector<1x64xf32> to vector<2x64xf32>
    %162 = arith.addf %160, %161 : vector<2x64xf32>
    %cst_49 = arith.constant dense<0.000000e+00> : vector<2x64xf32>
    %163 = tpu.matmul %156, %0, %cst_49 {dimension_numbers = #tpu.dot_dimension_numbers<[1], [0], [0], [1], [0, 0, 1, 1], [], []>} : vector<2x16xf32>, vector<16x64xf32>, vector<2x64xf32> -> vector<2x64xf32>
    %164 = arith.addf %162, %163 : vector<2x64xf32>
    %165 = math.tanh %164 : vector<2x64xf32>
    %166 = vector.extract_strided_slice %165 {offsets = [0, 0], sizes = [2, 16], strides = [1, 1]} : vector<2x64xf32> to vector<2x16xf32>
    %cst_50 = arith.constant 5.000000e-01 : f32
    %167 = vector.broadcast %cst_50 : f32 to vector<2x16xf32>
    %168 = arith.mulf %167, %166 : vector<2x16xf32>
    %cst_51 = arith.constant 5.000000e-01 : f32
    %169 = vector.broadcast %cst_51 : f32 to vector<2x16xf32>
    %170 = arith.addf %168, %169 : vector<2x16xf32>
    %171 = vector.extract_strided_slice %165 {offsets = [0, 16], sizes = [2, 16], strides = [1, 1]} : vector<2x64xf32> to vector<2x16xf32>
    %cst_52 = arith.constant 5.000000e-01 : f32
    %172 = vector.broadcast %cst_52 : f32 to vector<2x16xf32>
    %173 = arith.mulf %172, %171 : vector<2x16xf32>
    %cst_53 = arith.constant 5.000000e-01 : f32
    %174 = vector.broadcast %cst_53 : f32 to vector<2x16xf32>
    %175 = arith.addf %173, %174 : vector<2x16xf32>
    %176 = vector.extract_strided_slice %165 {offsets = [0, 32], sizes = [2, 16], strides = [1, 1]} : vector<2x64xf32> to vector<2x16xf32>
    %177 = vector.extract_strided_slice %165 {offsets = [0, 48], sizes = [2, 16], strides = [1, 1]} : vector<2x64xf32> to vector<2x16xf32>
    %cst_54 = arith.constant 5.000000e-01 : f32
    %178 = vector.broadcast %cst_54 : f32 to vector<2x16xf32>
    %179 = arith.mulf %178, %177 : vector<2x16xf32>
    %cst_55 = arith.constant 5.000000e-01 : f32
    %180 = vector.broadcast %cst_55 : f32 to vector<2x16xf32>
    %181 = arith.addf %179, %180 : vector<2x16xf32>
    %182 = arith.mulf %175, %154 : vector<2x16xf32>
    %183 = arith.mulf %170, %176 : vector<2x16xf32>
    %184 = arith.addf %182, %183 : vector<2x16xf32>
    %185 = math.tanh %184 : vector<2x16xf32>
    %186 = arith.mulf %181, %185 : vector<2x16xf32>
    %c0_56 = arith.constant 0 : index
    %c6 = arith.constant 6 : index
    %187 = vector.load %arg1[%c0_56, %c6] : memref<2x8xf32, #tpu.memory_space<vmem>>, vector<2x1xf32>
    %188 = vector.broadcast %187 : vector<2x1xf32> to vector<2x64xf32>
    %189 = vector.broadcast %1 : vector<1x64xf32> to vector<2x64xf32>
    %190 = arith.mulf %188, %189 : vector<2x64xf32>
    %191 = vector.broadcast %2 : vector<1x64xf32> to vector<2x64xf32>
    %192 = arith.addf %190, %191 : vector<2x64xf32>
    %cst_57 = arith.constant dense<0.000000e+00> : vector<2x64xf32>
    %193 = tpu.matmul %186, %0, %cst_57 {dimension_numbers = #tpu.dot_dimension_numbers<[1], [0], [0], [1], [0, 0, 1, 1], [], []>} : vector<2x16xf32>, vector<16x64xf32>, vector<2x64xf32> -> vector<2x64xf32>
    %194 = arith.addf %192, %193 : vector<2x64xf32>
    %195 = math.tanh %194 : vector<2x64xf32>
    %196 = vector.extract_strided_slice %195 {offsets = [0, 0], sizes = [2, 16], strides = [1, 1]} : vector<2x64xf32> to vector<2x16xf32>
    %cst_58 = arith.constant 5.000000e-01 : f32
    %197 = vector.broadcast %cst_58 : f32 to vector<2x16xf32>
    %198 = arith.mulf %197, %196 : vector<2x16xf32>
    %cst_59 = arith.constant 5.000000e-01 : f32
    %199 = vector.broadcast %cst_59 : f32 to vector<2x16xf32>
    %200 = arith.addf %198, %199 : vector<2x16xf32>
    %201 = vector.extract_strided_slice %195 {offsets = [0, 16], sizes = [2, 16], strides = [1, 1]} : vector<2x64xf32> to vector<2x16xf32>
    %cst_60 = arith.constant 5.000000e-01 : f32
    %202 = vector.broadcast %cst_60 : f32 to vector<2x16xf32>
    %203 = arith.mulf %202, %201 : vector<2x16xf32>
    %cst_61 = arith.constant 5.000000e-01 : f32
    %204 = vector.broadcast %cst_61 : f32 to vector<2x16xf32>
    %205 = arith.addf %203, %204 : vector<2x16xf32>
    %206 = vector.extract_strided_slice %195 {offsets = [0, 32], sizes = [2, 16], strides = [1, 1]} : vector<2x64xf32> to vector<2x16xf32>
    %207 = vector.extract_strided_slice %195 {offsets = [0, 48], sizes = [2, 16], strides = [1, 1]} : vector<2x64xf32> to vector<2x16xf32>
    %cst_62 = arith.constant 5.000000e-01 : f32
    %208 = vector.broadcast %cst_62 : f32 to vector<2x16xf32>
    %209 = arith.mulf %208, %207 : vector<2x16xf32>
    %cst_63 = arith.constant 5.000000e-01 : f32
    %210 = vector.broadcast %cst_63 : f32 to vector<2x16xf32>
    %211 = arith.addf %209, %210 : vector<2x16xf32>
    %212 = arith.mulf %205, %184 : vector<2x16xf32>
    %213 = arith.mulf %200, %206 : vector<2x16xf32>
    %214 = arith.addf %212, %213 : vector<2x16xf32>
    %215 = math.tanh %214 : vector<2x16xf32>
    %216 = arith.mulf %211, %215 : vector<2x16xf32>
    %c0_64 = arith.constant 0 : index
    %c7 = arith.constant 7 : index
    %217 = vector.load %arg1[%c0_64, %c7] : memref<2x8xf32, #tpu.memory_space<vmem>>, vector<2x1xf32>
    %218 = vector.broadcast %217 : vector<2x1xf32> to vector<2x64xf32>
    %219 = vector.broadcast %1 : vector<1x64xf32> to vector<2x64xf32>
    %220 = arith.mulf %218, %219 : vector<2x64xf32>
    %221 = vector.broadcast %2 : vector<1x64xf32> to vector<2x64xf32>
    %222 = arith.addf %220, %221 : vector<2x64xf32>
    %cst_65 = arith.constant dense<0.000000e+00> : vector<2x64xf32>
    %223 = tpu.matmul %216, %0, %cst_65 {dimension_numbers = #tpu.dot_dimension_numbers<[1], [0], [0], [1], [0, 0, 1, 1], [], []>} : vector<2x16xf32>, vector<16x64xf32>, vector<2x64xf32> -> vector<2x64xf32>
    %224 = arith.addf %222, %223 : vector<2x64xf32>
    %225 = math.tanh %224 : vector<2x64xf32>
    %226 = vector.extract_strided_slice %225 {offsets = [0, 0], sizes = [2, 16], strides = [1, 1]} : vector<2x64xf32> to vector<2x16xf32>
    %cst_66 = arith.constant 5.000000e-01 : f32
    %227 = vector.broadcast %cst_66 : f32 to vector<2x16xf32>
    %228 = arith.mulf %227, %226 : vector<2x16xf32>
    %cst_67 = arith.constant 5.000000e-01 : f32
    %229 = vector.broadcast %cst_67 : f32 to vector<2x16xf32>
    %230 = arith.addf %228, %229 : vector<2x16xf32>
    %231 = vector.extract_strided_slice %225 {offsets = [0, 16], sizes = [2, 16], strides = [1, 1]} : vector<2x64xf32> to vector<2x16xf32>
    %cst_68 = arith.constant 5.000000e-01 : f32
    %232 = vector.broadcast %cst_68 : f32 to vector<2x16xf32>
    %233 = arith.mulf %232, %231 : vector<2x16xf32>
    %cst_69 = arith.constant 5.000000e-01 : f32
    %234 = vector.broadcast %cst_69 : f32 to vector<2x16xf32>
    %235 = arith.addf %233, %234 : vector<2x16xf32>
    %236 = vector.extract_strided_slice %225 {offsets = [0, 32], sizes = [2, 16], strides = [1, 1]} : vector<2x64xf32> to vector<2x16xf32>
    %237 = vector.extract_strided_slice %225 {offsets = [0, 48], sizes = [2, 16], strides = [1, 1]} : vector<2x64xf32> to vector<2x16xf32>
    %cst_70 = arith.constant 5.000000e-01 : f32
    %238 = vector.broadcast %cst_70 : f32 to vector<2x16xf32>
    %239 = arith.mulf %238, %237 : vector<2x16xf32>
    %cst_71 = arith.constant 5.000000e-01 : f32
    %240 = vector.broadcast %cst_71 : f32 to vector<2x16xf32>
    %241 = arith.addf %239, %240 : vector<2x16xf32>
    %242 = arith.mulf %235, %214 : vector<2x16xf32>
    %243 = arith.mulf %230, %236 : vector<2x16xf32>
    %244 = arith.addf %242, %243 : vector<2x16xf32>
    %245 = math.tanh %244 : vector<2x16xf32>
    %246 = arith.mulf %241, %245 : vector<2x16xf32>
    %247 = vector.broadcast %3 : vector<1x16xf32> to vector<2x16xf32>
    %248 = arith.mulf %246, %247 : vector<2x16xf32>
    %cst_72 = arith.constant dense<0.000000e+00> : vector<2xf32>
    %249 = vector.multi_reduction <add>, %248, %cst_72 [1] : vector<2x16xf32> to vector<2xf32>
    %250 = vector.shape_cast %249 : vector<2xf32> to vector<2x1xf32>
    %251 = vector.broadcast %4 : vector<1x1xf32> to vector<2x1xf32>
    %252 = arith.addf %250, %251 : vector<2x1xf32>
    %c0_73 = arith.constant 0 : index
    %c0_74 = arith.constant 0 : index
    %253 = vector.load %arg3[%c0_73, %c0_74] : memref<2x1xf32, #tpu.memory_space<vmem>>, vector<2x1xf32>
    tpu.vector_store %arg3[%c0_73, %c0_74], %252 {strides = array<i32>} : memref<2x1xf32, #tpu.memory_space<vmem>>, vector<2x1xf32>,
    return
  }
  func.func @transform_0(%arg0: i32) -> (i32, i32) {
    %c0_i32 = arith.constant 0 : i32
    %c0_i32_0 = arith.constant 0 : i32
    return %arg0, %c0_i32 : i32, i32
  }
  func.func @transform_1(%arg0: i32) -> (i32, i32) {
    %c0_i32 = arith.constant 0 : i32
    %c0_i32_0 = arith.constant 0 : i32
    %c0_i32_1 = arith.constant 0 : i32
    return %c0_i32, %c0_i32_0 : i32, i32
  }
  func.func @transform_2(%arg0: i32) -> (i32, i32) {
    %c0_i32 = arith.constant 0 : i32
    %c0_i32_0 = arith.constant 0 : i32
    return %arg0, %c0_i32 : i32, i32
  }
}

</mosaic_0001>

<llo_original>
// kernel: simple_model_forward.1
$region0: #{simple_model_forward.1}
  #allocation0 [shape = 'u32[]', space=smem, size = 0x4, offset = 0x4, fixed_abs, tag = 'smem constant byte address 0x4 - core index']
  #allocation1 [shape = 'u32[144,128]{1,0:T(1,128)}', space=vmem, size = 0x12000, scoped, tag = 'internal scratch']
  %s0 = inlined_call_operand.vmem [shape: f32[2,8], index: 0, kind: input, shape index: {}]
  %s1 = inlined_call_operand.hbm [shape: f32[19,64], index: 1, kind: input, shape index: {}]
  %s2 = inlined_call_operand.vmem [shape: f32[2,1], index: 2, kind: output, shape index: {}]
  %s3 = sld [smem:[#allocation0]]
  $region22: #{simple_model_forward.1} parent=0
    _
  %s5 = ssub.s32 1, %s3
  %s6 = scalar_select 0, %s5, %s3
  $region1: #{simple_model_forward.1} parent=0
    #allocation2 [shape = 'u8[12288]{0}', space=vmem, size = 0x3000, scoped, tag = 'input window, operand 1, single buffered']
    #allocation3 [shape = 's32[1]{0}', space=sflag, size = 0x4, scoped, tag = 'scoped memory for simple_model_forward.1']
    %7 = vsyncpa [#allocation3], 0
    // Predicated region
    $region2: #{simple_model_forward.1} parent=1 // pred_check
      _
    $region3: #{simple_model_forward.1} parent=1 // pred_check_branch
      %9 = sbr.rel (0) target = $region5
    $region4: #{simple_model_forward.1} parent=1 // pred_region
      _
    $region5: #{simple_model_forward.1} parent=1 // pred_fallthru
      _
    // Predicated region
    $region6: #{simple_model_forward.1} parent=1 // pred_check
      _
    $region7: #{simple_model_forward.1} parent=1 // pred_check_branch
      %11 = sbr.rel (0) target = $region9
    $region8: #{simple_model_forward.1} parent=1 // pred_region
      %s13 = ssub.s32 384, 384
      %14 = vsyncadd [#allocation3], %s13
      %s15 = sshll.u32 [#allocation2], 4
      %s16 = int_to_ptr.vmem [resolvable:$true] %s15
      %21 = dma.hbm_to_vmem [thread:$0]  %s1, 384, %s16, [#allocation3], 128, 128, 8
    $region9: #{simple_model_forward.1} parent=1 // pred_fallthru
      _
    // Predicated region
    $region10: #{simple_model_forward.1} parent=1 // pred_check
      _
    $region11: #{simple_model_forward.1} parent=1 // pred_check_branch
      %23 = sbr.rel (0) target = $region13
    $region12: #{simple_model_forward.1} parent=1 // pred_region
      %24 = dma.done [#allocation3], 384
    $region13: #{simple_model_forward.1} parent=1 // pred_fallthru
      _
    %v25 = vld [vmem:[#allocation2] sm:$0xff]
    %v26 = vld [vmem:[#allocation2 + $0x8] sm:$0xff]
    %v27 = vld [vmem:[#allocation2 + $0x10] sm:$0x1]
    %v28 = vld [vmem:[#allocation2 + $0x11] sm:$0x1]
    %v29 = vld [vmem:[#allocation2 + $0x12] sm:$0x1]
    %v30 = vld [vmem:[%s0] sm:$0x3]
    %32 = vset.pattern.permute.xlu0 0
    %33 = vperm.xlu0 %32, %v30
    %v34 = vpop.permute.xlu0 %33
    %v36 = vlaneseq
    %v37 = vshrl.u32 %v36, 7
    %v38 = vsub.s32 0, %v37
    %v39 = vrot.slane %v27, %v38
    %v40 = vmul.f32 %v34, %v39
    %v41 = vlaneseq
    %v42 = vshrl.u32 %v41, 7
    %v43 = vsub.s32 0, %v42
    %v44 = vrot.slane %v28, %v43
    %v45 = vadd.f32 %v40, %v44
    %vm46 = vcmask 130048
    %v48 = vsel %vm46, 0.0, 0
    %50 = vmatprep.subr.mxu0 0.0
    %51 = vmatpush1.msra.mxu0 %v25
    %52 = vmatprep.subr.mxu0 0.0
    %53 = vmatpush1.msra.mxu0 %v26
    %54 = vmatprep.subr.mxu0 0.0
    %55 = vmatpush1.msra.mxu0 0.0
    %56 = vmatprep.subr.mxu0 0.0
    %57 = vmatpush1.msra.mxu0 0.0
    %58 = vmatprep.subr.mxu0 0.0
    %59 = vmatpush1.msra.mxu0 0.0
    %60 = vmatprep.subr.mxu0 0.0
    %61 = vmatpush1.msra.mxu0 0.0
    %62 = vmatprep.subr.mxu0 0.0
    %63 = vmatpush1.msra.mxu0 0.0
    %64 = vmatprep.subr.mxu0 0.0
    %65 = vmatpush1.msra.mxu0 0.0
    %66 = vmatprep.subr.mxu0 0.0
    %67 = vmatpush1.msra.mxu0 0.0
    %68 = vmatprep.subr.mxu0 0.0
    %69 = vmatpush1.msra.mxu0 0.0
    %70 = vmatprep.subr.mxu0 0.0
    %71 = vmatpush1.msra.mxu0 0.0
    %72 = vmatprep.subr.mxu0 0.0
    %73 = vmatpush1.msra.mxu0 0.0
    %74 = vmatprep.subr.mxu0 0.0
    %75 = vmatpush1.msra.mxu0 0.0
    %76 = vmatprep.subr.mxu0 0.0
    %77 = vmatpush1.msra.mxu0 0.0
    %78 = vmatprep.subr.mxu0 0.0
    %79 = vmatpush1.msra.mxu0 0.0
    %80 = vmatprep.subr.mxu0 0.0
    %81 = vmatpush1.msra.mxu0 0.0
    %82 = vmatprep.subr.mxu0 0.0
    %83 = vmatpush1.msra.mxu0 0.0
    %84 = vmatprep.subr.mxu0 0.0
    %85 = vmatpush1.msra.mxu0 0.0
    %86 = vmatprep.subr.mxu0 0.0
    %87 = vmatpush1.msra.mxu0 0.0
    %88 = vmatprep.subr.mxu0 0.0
    %89 = vmatpush1.msra.mxu0 0.0
    %90 = vmatprep.subr.mxu0 0.0
    %91 = vmatpush1.msra.mxu0 0.0
    %92 = vmatprep.subr.mxu0 0.0
    %93 = vmatpush1.msra.mxu0 0.0
    %94 = vmatprep.subr.mxu0 0.0
    %95 = vmatpush1.msra.mxu0 0.0
    %96 = vmatprep.subr.mxu0 0.0
    %97 = vmatpush1.msra.mxu0 0.0
    %98 = vmatprep.subr.mxu0 0.0
    %99 = vmatpush1.msra.mxu0 0.0
    %100 = vmatprep.subr.mxu0 0.0
    %101 = vmatpush1.msra.mxu0 0.0
    %102 = vmatprep.subr.mxu0 0.0
    %103 = vmatpush1.msra.mxu0 0.0
    %104 = vmatprep.subr.mxu0 0.0
    %105 = vmatpush1.msra.mxu0 0.0
    %106 = vmatprep.subr.mxu0 0.0
    %107 = vmatpush1.msra.mxu0 0.0
    %108 = vmatprep.subr.mxu0 0.0
    %109 = vmatpush1.msra.mxu0 0.0
    %110 = vmatprep.subr.mxu0 0.0
    %111 = vmatpush1.msra.mxu0 0.0
    %112 = vmatprep.subr.mxu0 0.0
    %113 = vmatpush1.msra.mxu0 0.0
    %114 = vmatprep.mubr.f32.mxu0 0.0
    %115 = vmatmul.mubr.f32.gmra.mrb[0].mxu0 %v48
    %v116 = vpop.f32.mrb[0].mxu0
    %v117 = vadd.f32 0.0, %v116
    %v118 = vpop.f32.mrb[0].mxu0
    %119 = vdwg.mxu0
    %v120 = vadd.f32 %v45, %v117
    %v121 = vtanh.pop %v120
    %v122 = vmul.f32 %v121, 0.5
    %v123 = vadd.f32 %v122, 0.5
    %v124 = vmul.f32 %v123, 0.0
    %126 = vrot.lane.b32.xlu0 %v121, 96
    %v127 = vpop.permute.xlu0 %126
    %v129 = vmul.f32 %v123, %v127
    %131 = vrot.lane.b32.xlu0 %v129, 16
    %v132 = vpop.permute.xlu0 %131
    %v134 = vadd.f32 %v124, %v132
    %v135 = vtanh.pop %v134
    %137 = vrot.lane.b32.xlu0 %v135, 32
    %v138 = vpop.permute.xlu0 %137
    %v140 = vmul.f32 %v123, %v138
    %141 = vset.pattern.permute.xlu0 1
    %142 = vperm.xlu0 %141, %v30
    %v143 = vpop.permute.xlu0 %142
    %v145 = vmul.f32 %v143, %v39
    %v146 = vadd.f32 %v145, %v44
    %148 = vrot.lane.b32.xlu0 %v140, 80
    %v149 = vpop.permute.xlu0 %148
    %v150 = vsel %vm46, %v149, 0
    %152 = vmatprep.subr.mxu0 0.0
    %153 = vmatpush1.msra.mxu0 %v25
    %154 = vmatprep.subr.mxu0 0.0
    %155 = vmatpush1.msra.mxu0 %v26
    %156 = vmatprep.subr.mxu0 0.0
    %157 = vmatpush1.msra.mxu0 0.0
    %158 = vmatprep.subr.mxu0 0.0
    %159 = vmatpush1.msra.mxu0 0.0
    %160 = vmatprep.subr.mxu0 0.0
    %161 = vmatpush1.msra.mxu0 0.0
    %162 = vmatprep.subr.mxu0 0.0
    %163 = vmatpush1.msra.mxu0 0.0
    %164 = vmatprep.subr.mxu0 0.0
    %165 = vmatpush1.msra.mxu0 0.0
    %166 = vmatprep.subr.mxu0 0.0
    %167 = vmatpush1.msra.mxu0 0.0
    %168 = vmatprep.subr.mxu0 0.0
    %169 = vmatpush1.msra.mxu0 0.0
    %170 = vmatprep.subr.mxu0 0.0
    %171 = vmatpush1.msra.mxu0 0.0
    %172 = vmatprep.subr.mxu0 0.0
    %173 = vmatpush1.msra.mxu0 0.0
    %174 = vmatprep.subr.mxu0 0.0
    %175 = vmatpush1.msra.mxu0 0.0
    %176 = vmatprep.subr.mxu0 0.0
    %177 = vmatpush1.msra.mxu0 0.0
    %178 = vmatprep.subr.mxu0 0.0
    %179 = vmatpush1.msra.mxu0 0.0
    %180 = vmatprep.subr.mxu0 0.0
    %181 = vmatpush1.msra.mxu0 0.0
    %182 = vmatprep.subr.mxu0 0.0
    %183 = vmatpush1.msra.mxu0 0.0
    %184 = vmatprep.subr.mxu0 0.0
    %185 = vmatpush1.msra.mxu0 0.0
    %186 = vmatprep.subr.mxu0 0.0
    %187 = vmatpush1.msra.mxu0 0.0
    %188 = vmatprep.subr.mxu0 0.0
    %189 = vmatpush1.msra.mxu0 0.0
    %190 = vmatprep.subr.mxu0 0.0
    %191 = vmatpush1.msra.mxu0 0.0
    %192 = vmatprep.subr.mxu0 0.0
    %193 = vmatpush1.msra.mxu0 0.0
    %194 = vmatprep.subr.mxu0 0.0
    %195 = vmatpush1.msra.mxu0 0.0
    %196 = vmatprep.subr.mxu0 0.0
    %197 = vmatpush1.msra.mxu0 0.0
    %198 = vmatprep.subr.mxu0 0.0
    %199 = vmatpush1.msra.mxu0 0.0
    %200 = vmatprep.subr.mxu0 0.0
    %201 = vmatpush1.msra.mxu0 0.0
    %202 = vmatprep.subr.mxu0 0.0
    %203 = vmatpush1.msra.mxu0 0.0
    %204 = vmatprep.subr.mxu0 0.0
    %205 = vmatpush1.msra.mxu0 0.0
    %206 = vmatprep.subr.mxu0 0.0
    %207 = vmatpush1.msra.mxu0 0.0
    %208 = vmatprep.subr.mxu0 0.0
    %209 = vmatpush1.msra.mxu0 0.0
    %210 = vmatprep.subr.mxu0 0.0
    %211 = vmatpush1.msra.mxu0 0.0
    %212 = vmatprep.subr.mxu0 0.0
    %213 = vmatpush1.msra.mxu0 0.0
    %214 = vmatprep.subr.mxu0 0.0
    %215 = vmatpush1.msra.mxu0 0.0
    %216 = vmatprep.mubr.f32.mxu0 0.0
    %217 = vmatmul.mubr.f32.gmra.mrb[0].mxu0 %v150
    %v218 = vpop.f32.mrb[0].mxu0
    %v219 = vadd.f32 0.0, %v218
    %v220 = vpop.f32.mrb[0].mxu0
    %221 = vdwg.mxu0
    %v222 = vadd.f32 %v146, %v219
    %v223 = vtanh.pop %v222
    %v224 = vmul.f32 %v223, 0.5
    %v225 = vadd.f32 %v224, 0.5
    %v226 = vmul.f32 %v225, %v134
    %228 = vrot.lane.b32.xlu0 %v223, 96
    %v229 = vpop.permute.xlu0 %228
    %v231 = vmul.f32 %v225, %v229
    %233 = vrot.lane.b32.xlu0 %v231, 16
    %v234 = vpop.permute.xlu0 %233
    %v236 = vadd.f32 %v226, %v234
    %v237 = vtanh.pop %v236
    %239 = vrot.lane.b32.xlu0 %v237, 32
    %v240 = vpop.permute.xlu0 %239
    %v242 = vmul.f32 %v225, %v240
    %243 = vset.pattern.permute.xlu0 2
    %244 = vperm.xlu0 %243, %v30
    %v245 = vpop.permute.xlu0 %244
    %v247 = vmul.f32 %v245, %v39
    %v248 = vadd.f32 %v247, %v44
    %250 = vrot.lane.b32.xlu0 %v242, 80
    %v251 = vpop.permute.xlu0 %250
    %v252 = vsel %vm46, %v251, 0
    %254 = vmatprep.subr.mxu0 0.0
    %255 = vmatpush1.msra.mxu0 %v25
    %256 = vmatprep.subr.mxu0 0.0
    %257 = vmatpush1.msra.mxu0 %v26
    %258 = vmatprep.subr.mxu0 0.0
    %259 = vmatpush1.msra.mxu0 0.0
    %260 = vmatprep.subr.mxu0 0.0
    %261 = vmatpush1.msra.mxu0 0.0
    %262 = vmatprep.subr.mxu0 0.0
    %263 = vmatpush1.msra.mxu0 0.0
    %264 = vmatprep.subr.mxu0 0.0
    %265 = vmatpush1.msra.mxu0 0.0
    %266 = vmatprep.subr.mxu0 0.0
    %267 = vmatpush1.msra.mxu0 0.0
    %268 = vmatprep.subr.mxu0 0.0
    %269 = vmatpush1.msra.mxu0 0.0
    %270 = vmatprep.subr.mxu0 0.0
    %271 = vmatpush1.msra.mxu0 0.0
    %272 = vmatprep.subr.mxu0 0.0
    %273 = vmatpush1.msra.mxu0 0.0
    %274 = vmatprep.subr.mxu0 0.0
    %275 = vmatpush1.msra.mxu0 0.0
    %276 = vmatprep.subr.mxu0 0.0
    %277 = vmatpush1.msra.mxu0 0.0
    %278 = vmatprep.subr.mxu0 0.0
    %279 = vmatpush1.msra.mxu0 0.0
    %280 = vmatprep.subr.mxu0 0.0
    %281 = vmatpush1.msra.mxu0 0.0
    %282 = vmatprep.subr.mxu0 0.0
    %283 = vmatpush1.msra.mxu0 0.0
    %284 = vmatprep.subr.mxu0 0.0
    %285 = vmatpush1.msra.mxu0 0.0
    %286 = vmatprep.subr.mxu0 0.0
    %287 = vmatpush1.msra.mxu0 0.0
    %288 = vmatprep.subr.mxu0 0.0
    %289 = vmatpush1.msra.mxu0 0.0
    %290 = vmatprep.subr.mxu0 0.0
    %291 = vmatpush1.msra.mxu0 0.0
    %292 = vmatprep.subr.mxu0 0.0
    %293 = vmatpush1.msra.mxu0 0.0
    %294 = vmatprep.subr.mxu0 0.0
    %295 = vmatpush1.msra.mxu0 0.0
    %296 = vmatprep.subr.mxu0 0.0
    %297 = vmatpush1.msra.mxu0 0.0
    %298 = vmatprep.subr.mxu0 0.0
    %299 = vmatpush1.msra.mxu0 0.0
    %300 = vmatprep.subr.mxu0 0.0
    %301 = vmatpush1.msra.mxu0 0.0
    %302 = vmatprep.subr.mxu0 0.0
    %303 = vmatpush1.msra.mxu0 0.0
    %304 = vmatprep.subr.mxu0 0.0
    %305 = vmatpush1.msra.mxu0 0.0
    %306 = vmatprep.subr.mxu0 0.0
    %307 = vmatpush1.msra.mxu0 0.0
    %308 = vmatprep.subr.mxu0 0.0
    %309 = vmatpush1.msra.mxu0 0.0
    %310 = vmatprep.subr.mxu0 0.0
    %311 = vmatpush1.msra.mxu0 0.0
    %312 = vmatprep.subr.mxu0 0.0
    %313 = vmatpush1.msra.mxu0 0.0
    %314 = vmatprep.subr.mxu0 0.0
    %315 = vmatpush1.msra.mxu0 0.0
    %316 = vmatprep.subr.mxu0 0.0
    %317 = vmatpush1.msra.mxu0 0.0
    %318 = vmatprep.mubr.f32.mxu0 0.0
    %319 = vmatmul.mubr.f32.gmra.mrb[0].mxu0 %v252
    %v320 = vpop.f32.mrb[0].mxu0
    %v321 = vadd.f32 0.0, %v320
    %v322 = vpop.f32.mrb[0].mxu0
    %323 = vdwg.mxu0
    %v324 = vadd.f32 %v248, %v321
    %v325 = vtanh.pop %v324
    %v326 = vmul.f32 %v325, 0.5
    %v327 = vadd.f32 %v326, 0.5
    %v328 = vmul.f32 %v327, %v236
    %330 = vrot.lane.b32.xlu0 %v325, 96
    %v331 = vpop.permute.xlu0 %330
    %v333 = vmul.f32 %v327, %v331
    %335 = vrot.lane.b32.xlu0 %v333, 16
    %v336 = vpop.permute.xlu0 %335
    %v338 = vadd.f32 %v328, %v336
    %v339 = vtanh.pop %v338
    %341 = vrot.lane.b32.xlu0 %v339, 32
    %v342 = vpop.permute.xlu0 %341
    %v344 = vmul.f32 %v327, %v342
    %345 = vset.pattern.permute.xlu0 3
    %346 = vperm.xlu0 %345, %v30
    %v347 = vpop.permute.xlu0 %346
    %v349 = vmul.f32 %v347, %v39
    %v350 = vadd.f32 %v349, %v44
    %352 = vrot.lane.b32.xlu0 %v344, 80
    %v353 = vpop.permute.xlu0 %352
    %v354 = vsel %vm46, %v353, 0
    %356 = vmatprep.subr.mxu0 0.0
    %357 = vmatpush1.msra.mxu0 %v25
    %358 = vmatprep.subr.mxu0 0.0
    %359 = vmatpush1.msra.mxu0 %v26
    %360 = vmatprep.subr.mxu0 0.0
    %361 = vmatpush1.msra.mxu0 0.0
    %362 = vmatprep.subr.mxu0 0.0
    %363 = vmatpush1.msra.mxu0 0.0
    %364 = vmatprep.subr.mxu0 0.0
    %365 = vmatpush1.msra.mxu0 0.0
    %366 = vmatprep.subr.mxu0 0.0
    %367 = vmatpush1.msra.mxu0 0.0
    %368 = vmatprep.subr.mxu0 0.0
    %369 = vmatpush1.msra.mxu0 0.0
    %370 = vmatprep.subr.mxu0 0.0
    %371 = vmatpush1.msra.mxu0 0.0
    %372 = vmatprep.subr.mxu0 0.0
    %373 = vmatpush1.msra.mxu0 0.0
    %374 = vmatprep.subr.mxu0 0.0
    %375 = vmatpush1.msra.mxu0 0.0
    %376 = vmatprep.subr.mxu0 0.0
    %377 = vmatpush1.msra.mxu0 0.0
    %378 = vmatprep.subr.mxu0 0.0
    %379 = vmatpush1.msra.mxu0 0.0
    %380 = vmatprep.subr.mxu0 0.0
    %381 = vmatpush1.msra.mxu0 0.0
    %382 = vmatprep.subr.mxu0 0.0
    %383 = vmatpush1.msra.mxu0 0.0
    %384 = vmatprep.subr.mxu0 0.0
    %385 = vmatpush1.msra.mxu0 0.0
    %386 = vmatprep.subr.mxu0 0.0
    %387 = vmatpush1.msra.mxu0 0.0
    %388 = vmatprep.subr.mxu0 0.0
    %389 = vmatpush1.msra.mxu0 0.0
    %390 = vmatprep.subr.mxu0 0.0
    %391 = vmatpush1.msra.mxu0 0.0
    %392 = vmatprep.subr.mxu0 0.0
    %393 = vmatpush1.msra.mxu0 0.0
    %394 = vmatprep.subr.mxu0 0.0
    %395 = vmatpush1.msra.mxu0 0.0
    %396 = vmatprep.subr.mxu0 0.0
    %397 = vmatpush1.msra.mxu0 0.0
    %398 = vmatprep.subr.mxu0 0.0
    %399 = vmatpush1.msra.mxu0 0.0
    %400 = vmatprep.subr.mxu0 0.0
    %401 = vmatpush1.msra.mxu0 0.0
    %402 = vmatprep.subr.mxu0 0.0
    %403 = vmatpush1.msra.mxu0 0.0
    %404 = vmatprep.subr.mxu0 0.0
    %405 = vmatpush1.msra.mxu0 0.0
    %406 = vmatprep.subr.mxu0 0.0
    %407 = vmatpush1.msra.mxu0 0.0
    %408 = vmatprep.subr.mxu0 0.0
    %409 = vmatpush1.msra.mxu0 0.0
    %410 = vmatprep.subr.mxu0 0.0
    %411 = vmatpush1.msra.mxu0 0.0
    %412 = vmatprep.subr.mxu0 0.0
    %413 = vmatpush1.msra.mxu0 0.0
    %414 = vmatprep.subr.mxu0 0.0
    %415 = vmatpush1.msra.mxu0 0.0
    %416 = vmatprep.subr.mxu0 0.0
    %417 = vmatpush1.msra.mxu0 0.0
    %418 = vmatprep.subr.mxu0 0.0
    %419 = vmatpush1.msra.mxu0 0.0
    %420 = vmatprep.mubr.f32.mxu0 0.0
    %421 = vmatmul.mubr.f32.gmra.mrb[0].mxu0 %v354
    %v422 = vpop.f32.mrb[0].mxu0
    %v423 = vadd.f32 0.0, %v422
    %v424 = vpop.f32.mrb[0].mxu0
    %425 = vdwg.mxu0
    %v426 = vadd.f32 %v350, %v423
    %v427 = vtanh.pop %v426
    %v428 = vmul.f32 %v427, 0.5
    %v429 = vadd.f32 %v428, 0.5
    %v430 = vmul.f32 %v429, %v338
    %432 = vrot.lane.b32.xlu0 %v427, 96
    %v433 = vpop.permute.xlu0 %432
    %v435 = vmul.f32 %v429, %v433
    %437 = vrot.lane.b32.xlu0 %v435, 16
    %v438 = vpop.permute.xlu0 %437
    %v440 = vadd.f32 %v430, %v438
    %v441 = vtanh.pop %v440
    %443 = vrot.lane.b32.xlu0 %v441, 32
    %v444 = vpop.permute.xlu0 %443
    %v446 = vmul.f32 %v429, %v444
    %447 = vset.pattern.permute.xlu0 4
    %448 = vperm.xlu0 %447, %v30
    %v449 = vpop.permute.xlu0 %448
    %v451 = vmul.f32 %v449, %v39
    %v452 = vadd.f32 %v451, %v44
    %454 = vrot.lane.b32.xlu0 %v446, 80
    %v455 = vpop.permute.xlu0 %454
    %v456 = vsel %vm46, %v455, 0
    %458 = vmatprep.subr.mxu0 0.0
    %459 = vmatpush1.msra.mxu0 %v25
    %460 = vmatprep.subr.mxu0 0.0
    %461 = vmatpush1.msra.mxu0 %v26
    %462 = vmatprep.subr.mxu0 0.0
    %463 = vmatpush1.msra.mxu0 0.0
    %464 = vmatprep.subr.mxu0 0.0
    %465 = vmatpush1.msra.mxu0 0.0
    %466 = vmatprep.subr.mxu0 0.0
    %467 = vmatpush1.msra.mxu0 0.0
    %468 = vmatprep.subr.mxu0 0.0
    %469 = vmatpush1.msra.mxu0 0.0
    %470 = vmatprep.subr.mxu0 0.0
    %471 = vmatpush1.msra.mxu0 0.0
    %472 = vmatprep.subr.mxu0 0.0
    %473 = vmatpush1.msra.mxu0 0.0
    %474 = vmatprep.subr.mxu0 0.0
    %475 = vmatpush1.msra.mxu0 0.0
    %476 = vmatprep.subr.mxu0 0.0
    %477 = vmatpush1.msra.mxu0 0.0
    %478 = vmatprep.subr.mxu0 0.0
    %479 = vmatpush1.msra.mxu0 0.0
    %480 = vmatprep.subr.mxu0 0.0
    %481 = vmatpush1.msra.mxu0 0.0
    %482 = vmatprep.subr.mxu0 0.0
    %483 = vmatpush1.msra.mxu0 0.0
    %484 = vmatprep.subr.mxu0 0.0
    %485 = vmatpush1.msra.mxu0 0.0
    %486 = vmatprep.subr.mxu0 0.0
    %487 = vmatpush1.msra.mxu0 0.0
    %488 = vmatprep.subr.mxu0 0.0
    %489 = vmatpush1.msra.mxu0 0.0
    %490 = vmatprep.subr.mxu0 0.0
    %491 = vmatpush1.msra.mxu0 0.0
    %492 = vmatprep.subr.mxu0 0.0
    %493 = vmatpush1.msra.mxu0 0.0
    %494 = vmatprep.subr.mxu0 0.0
    %495 = vmatpush1.msra.mxu0 0.0
    %496 = vmatprep.subr.mxu0 0.0
    %497 = vmatpush1.msra.mxu0 0.0
    %498 = vmatprep.subr.mxu0 0.0
    %499 = vmatpush1.msra.mxu0 0.0
    %500 = vmatprep.subr.mxu0 0.0
    %501 = vmatpush1.msra.mxu0 0.0
    %502 = vmatprep.subr.mxu0 0.0
    %503 = vmatpush1.msra.mxu0 0.0
    %504 = vmatprep.subr.mxu0 0.0
    %505 = vmatpush1.msra.mxu0 0.0
    %506 = vmatprep.subr.mxu0 0.0
    %507 = vmatpush1.msra.mxu0 0.0
    %508 = vmatprep.subr.mxu0 0.0
    %509 = vmatpush1.msra.mxu0 0.0
    %510 = vmatprep.subr.mxu0 0.0
    %511 = vmatpush1.msra.mxu0 0.0
    %512 = vmatprep.subr.mxu0 0.0
    %513 = vmatpush1.msra.mxu0 0.0
    %514 = vmatprep.subr.mxu0 0.0
    %515 = vmatpush1.msra.mxu0 0.0
    %516 = vmatprep.subr.mxu0 0.0
    %517 = vmatpush1.msra.mxu0 0.0
    %518 = vmatprep.subr.mxu0 0.0
    %519 = vmatpush1.msra.mxu0 0.0
    %520 = vmatprep.subr.mxu0 0.0
    %521 = vmatpush1.msra.mxu0 0.0
    %522 = vmatprep.mubr.f32.mxu0 0.0
    %523 = vmatmul.mubr.f32.gmra.mrb[0].mxu0 %v456
    %v524 = vpop.f32.mrb[0].mxu0
    %v525 = vadd.f32 0.0, %v524
    %v526 = vpop.f32.mrb[0].mxu0
    %527 = vdwg.mxu0
    %v528 = vadd.f32 %v452, %v525
    %v529 = vtanh.pop %v528
    %v530 = vmul.f32 %v529, 0.5
    %v531 = vadd.f32 %v530, 0.5
    %v532 = vmul.f32 %v531, %v440
    %534 = vrot.lane.b32.xlu0 %v529, 96
    %v535 = vpop.permute.xlu0 %534
    %v537 = vmul.f32 %v531, %v535
    %539 = vrot.lane.b32.xlu0 %v537, 16
    %v540 = vpop.permute.xlu0 %539
    %v542 = vadd.f32 %v532, %v540
    %v543 = vtanh.pop %v542
    %545 = vrot.lane.b32.xlu0 %v543, 32
    %v546 = vpop.permute.xlu0 %545
    %v548 = vmul.f32 %v531, %v546
    %549 = vset.pattern.permute.xlu0 5
    %550 = vperm.xlu0 %549, %v30
    %v551 = vpop.permute.xlu0 %550
    %v553 = vmul.f32 %v551, %v39
    %v554 = vadd.f32 %v553, %v44
    %556 = vrot.lane.b32.xlu0 %v548, 80
    %v557 = vpop.permute.xlu0 %556
    %v558 = vsel %vm46, %v557, 0
    %560 = vmatprep.subr.mxu0 0.0
    %561 = vmatpush1.msra.mxu0 %v25
    %562 = vmatprep.subr.mxu0 0.0
    %563 = vmatpush1.msra.mxu0 %v26
    %564 = vmatprep.subr.mxu0 0.0
    %565 = vmatpush1.msra.mxu0 0.0
    %566 = vmatprep.subr.mxu0 0.0
    %567 = vmatpush1.msra.mxu0 0.0
    %568 = vmatprep.subr.mxu0 0.0
    %569 = vmatpush1.msra.mxu0 0.0
    %570 = vmatprep.subr.mxu0 0.0
    %571 = vmatpush1.msra.mxu0 0.0
    %572 = vmatprep.subr.mxu0 0.0
    %573 = vmatpush1.msra.mxu0 0.0
    %574 = vmatprep.subr.mxu0 0.0
    %575 = vmatpush1.msra.mxu0 0.0
    %576 = vmatprep.subr.mxu0 0.0
    %577 = vmatpush1.msra.mxu0 0.0
    %578 = vmatprep.subr.mxu0 0.0
    %579 = vmatpush1.msra.mxu0 0.0
    %580 = vmatprep.subr.mxu0 0.0
    %581 = vmatpush1.msra.mxu0 0.0
    %582 = vmatprep.subr.mxu0 0.0
    %583 = vmatpush1.msra.mxu0 0.0
    %584 = vmatprep.subr.mxu0 0.0
    %585 = vmatpush1.msra.mxu0 0.0
    %586 = vmatprep.subr.mxu0 0.0
    %587 = vmatpush1.msra.mxu0 0.0
    %588 = vmatprep.subr.mxu0 0.0
    %589 = vmatpush1.msra.mxu0 0.0
    %590 = vmatprep.subr.mxu0 0.0
    %591 = vmatpush1.msra.mxu0 0.0
    %592 = vmatprep.subr.mxu0 0.0
    %593 = vmatpush1.msra.mxu0 0.0
    %594 = vmatprep.subr.mxu0 0.0
    %595 = vmatpush1.msra.mxu0 0.0
    %596 = vmatprep.subr.mxu0 0.0
    %597 = vmatpush1.msra.mxu0 0.0
    %598 = vmatprep.subr.mxu0 0.0
    %599 = vmatpush1.msra.mxu0 0.0
    %600 = vmatprep.subr.mxu0 0.0
    %601 = vmatpush1.msra.mxu0 0.0
    %602 = vmatprep.subr.mxu0 0.0
    %603 = vmatpush1.msra.mxu0 0.0
    %604 = vmatprep.subr.mxu0 0.0
    %605 = vmatpush1.msra.mxu0 0.0
    %606 = vmatprep.subr.mxu0 0.0
    %607 = vmatpush1.msra.mxu0 0.0
    %608 = vmatprep.subr.mxu0 0.0
    %609 = vmatpush1.msra.mxu0 0.0
    %610 = vmatprep.subr.mxu0 0.0
    %611 = vmatpush1.msra.mxu0 0.0
    %612 = vmatprep.subr.mxu0 0.0
    %613 = vmatpush1.msra.mxu0 0.0
    %614 = vmatprep.subr.mxu0 0.0
    %615 = vmatpush1.msra.mxu0 0.0
    %616 = vmatprep.subr.mxu0 0.0
    %617 = vmatpush1.msra.mxu0 0.0
    %618 = vmatprep.subr.mxu0 0.0
    %619 = vmatpush1.msra.mxu0 0.0
    %620 = vmatprep.subr.mxu0 0.0
    %621 = vmatpush1.msra.mxu0 0.0
    %622 = vmatprep.subr.mxu0 0.0
    %623 = vmatpush1.msra.mxu0 0.0
    %624 = vmatprep.mubr.f32.mxu0 0.0
    %625 = vmatmul.mubr.f32.gmra.mrb[0].mxu0 %v558
    %v626 = vpop.f32.mrb[0].mxu0
    %v627 = vadd.f32 0.0, %v626
    %v628 = vpop.f32.mrb[0].mxu0
    %629 = vdwg.mxu0
    %v630 = vadd.f32 %v554, %v627
    %v631 = vtanh.pop %v630
    %v632 = vmul.f32 %v631, 0.5
    %v633 = vadd.f32 %v632, 0.5
    %v634 = vmul.f32 %v633, %v542
    %636 = vrot.lane.b32.xlu0 %v631, 96
    %v637 = vpop.permute.xlu0 %636
    %v639 = vmul.f32 %v633, %v637
    %641 = vrot.lane.b32.xlu0 %v639, 16
    %v642 = vpop.permute.xlu0 %641
    %v644 = vadd.f32 %v634, %v642
    %v645 = vtanh.pop %v644
    %647 = vrot.lane.b32.xlu0 %v645, 32
    %v648 = vpop.permute.xlu0 %647
    %v650 = vmul.f32 %v633, %v648
    %651 = vset.pattern.permute.xlu0 6
    %652 = vperm.xlu0 %651, %v30
    %v653 = vpop.permute.xlu0 %652
    %v655 = vmul.f32 %v653, %v39
    %v656 = vadd.f32 %v655, %v44
    %658 = vrot.lane.b32.xlu0 %v650, 80
    %v659 = vpop.permute.xlu0 %658
    %v660 = vsel %vm46, %v659, 0
    %662 = vmatprep.subr.mxu0 0.0
    %663 = vmatpush1.msra.mxu0 %v25
    %664 = vmatprep.subr.mxu0 0.0
    %665 = vmatpush1.msra.mxu0 %v26
    %666 = vmatprep.subr.mxu0 0.0
    %667 = vmatpush1.msra.mxu0 0.0
    %668 = vmatprep.subr.mxu0 0.0
    %669 = vmatpush1.msra.mxu0 0.0
    %670 = vmatprep.subr.mxu0 0.0
    %671 = vmatpush1.msra.mxu0 0.0
    %672 = vmatprep.subr.mxu0 0.0
    %673 = vmatpush1.msra.mxu0 0.0
    %674 = vmatprep.subr.mxu0 0.0
    %675 = vmatpush1.msra.mxu0 0.0
    %676 = vmatprep.subr.mxu0 0.0
    %677 = vmatpush1.msra.mxu0 0.0
    %678 = vmatprep.subr.mxu0 0.0
    %679 = vmatpush1.msra.mxu0 0.0
    %680 = vmatprep.subr.mxu0 0.0
    %681 = vmatpush1.msra.mxu0 0.0
    %682 = vmatprep.subr.mxu0 0.0
    %683 = vmatpush1.msra.mxu0 0.0
    %684 = vmatprep.subr.mxu0 0.0
    %685 = vmatpush1.msra.mxu0 0.0
    %686 = vmatprep.subr.mxu0 0.0
    %687 = vmatpush1.msra.mxu0 0.0
    %688 = vmatprep.subr.mxu0 0.0
    %689 = vmatpush1.msra.mxu0 0.0
    %690 = vmatprep.subr.mxu0 0.0
    %691 = vmatpush1.msra.mxu0 0.0
    %692 = vmatprep.subr.mxu0 0.0
    %693 = vmatpush1.msra.mxu0 0.0
    %694 = vmatprep.subr.mxu0 0.0
    %695 = vmatpush1.msra.mxu0 0.0
    %696 = vmatprep.subr.mxu0 0.0
    %697 = vmatpush1.msra.mxu0 0.0
    %698 = vmatprep.subr.mxu0 0.0
    %699 = vmatpush1.msra.mxu0 0.0
    %700 = vmatprep.subr.mxu0 0.0
    %701 = vmatpush1.msra.mxu0 0.0
    %702 = vmatprep.subr.mxu0 0.0
    %703 = vmatpush1.msra.mxu0 0.0
    %704 = vmatprep.subr.mxu0 0.0
    %705 = vmatpush1.msra.mxu0 0.0
    %706 = vmatprep.subr.mxu0 0.0
    %707 = vmatpush1.msra.mxu0 0.0
    %708 = vmatprep.subr.mxu0 0.0
    %709 = vmatpush1.msra.mxu0 0.0
    %710 = vmatprep.subr.mxu0 0.0
    %711 = vmatpush1.msra.mxu0 0.0
    %712 = vmatprep.subr.mxu0 0.0
    %713 = vmatpush1.msra.mxu0 0.0
    %714 = vmatprep.subr.mxu0 0.0
    %715 = vmatpush1.msra.mxu0 0.0
    %716 = vmatprep.subr.mxu0 0.0
    %717 = vmatpush1.msra.mxu0 0.0
    %718 = vmatprep.subr.mxu0 0.0
    %719 = vmatpush1.msra.mxu0 0.0
    %720 = vmatprep.subr.mxu0 0.0
    %721 = vmatpush1.msra.mxu0 0.0
    %722 = vmatprep.subr.mxu0 0.0
    %723 = vmatpush1.msra.mxu0 0.0
    %724 = vmatprep.subr.mxu0 0.0
    %725 = vmatpush1.msra.mxu0 0.0
    %726 = vmatprep.mubr.f32.mxu0 0.0
    %727 = vmatmul.mubr.f32.gmra.mrb[0].mxu0 %v660
    %v728 = vpop.f32.mrb[0].mxu0
    %v729 = vadd.f32 0.0, %v728
    %v730 = vpop.f32.mrb[0].mxu0
    %731 = vdwg.mxu0
    %v732 = vadd.f32 %v656, %v729
    %v733 = vtanh.pop %v732
    %v734 = vmul.f32 %v733, 0.5
    %v735 = vadd.f32 %v734, 0.5
    %v736 = vmul.f32 %v735, %v644
    %738 = vrot.lane.b32.xlu0 %v733, 96
    %v739 = vpop.permute.xlu0 %738
    %v741 = vmul.f32 %v735, %v739
    %743 = vrot.lane.b32.xlu0 %v741, 16
    %v744 = vpop.permute.xlu0 %743
    %v746 = vadd.f32 %v736, %v744
    %v747 = vtanh.pop %v746
    %749 = vrot.lane.b32.xlu0 %v747, 32
    %v750 = vpop.permute.xlu0 %749
    %v752 = vmul.f32 %v735, %v750
    %753 = vset.pattern.permute.xlu0 7
    %754 = vperm.xlu0 %753, %v30
    %v755 = vpop.permute.xlu0 %754
    %v757 = vmul.f32 %v755, %v39
    %v758 = vadd.f32 %v757, %v44
    %760 = vrot.lane.b32.xlu0 %v752, 80
    %v761 = vpop.permute.xlu0 %760
    %v762 = vsel %vm46, %v761, 0
    %764 = vmatprep.subr.mxu0 0.0
    %765 = vmatpush1.msra.mxu0 %v25
    %766 = vmatprep.subr.mxu0 0.0
    %767 = vmatpush1.msra.mxu0 %v26
    %768 = vmatprep.subr.mxu0 0.0
    %769 = vmatpush1.msra.mxu0 0.0
    %770 = vmatprep.subr.mxu0 0.0
    %771 = vmatpush1.msra.mxu0 0.0
    %772 = vmatprep.subr.mxu0 0.0
    %773 = vmatpush1.msra.mxu0 0.0
    %774 = vmatprep.subr.mxu0 0.0
    %775 = vmatpush1.msra.mxu0 0.0
    %776 = vmatprep.subr.mxu0 0.0
    %777 = vmatpush1.msra.mxu0 0.0
    %778 = vmatprep.subr.mxu0 0.0
    %779 = vmatpush1.msra.mxu0 0.0
    %780 = vmatprep.subr.mxu0 0.0
    %781 = vmatpush1.msra.mxu0 0.0
    %782 = vmatprep.subr.mxu0 0.0
    %783 = vmatpush1.msra.mxu0 0.0
    %784 = vmatprep.subr.mxu0 0.0
    %785 = vmatpush1.msra.mxu0 0.0
    %786 = vmatprep.subr.mxu0 0.0
    %787 = vmatpush1.msra.mxu0 0.0
    %788 = vmatprep.subr.mxu0 0.0
    %789 = vmatpush1.msra.mxu0 0.0
    %790 = vmatprep.subr.mxu0 0.0
    %791 = vmatpush1.msra.mxu0 0.0
    %792 = vmatprep.subr.mxu0 0.0
    %793 = vmatpush1.msra.mxu0 0.0
    %794 = vmatprep.subr.mxu0 0.0
    %795 = vmatpush1.msra.mxu0 0.0
    %796 = vmatprep.subr.mxu0 0.0
    %797 = vmatpush1.msra.mxu0 0.0
    %798 = vmatprep.subr.mxu0 0.0
    %799 = vmatpush1.msra.mxu0 0.0
    %800 = vmatprep.subr.mxu0 0.0
    %801 = vmatpush1.msra.mxu0 0.0
    %802 = vmatprep.subr.mxu0 0.0
    %803 = vmatpush1.msra.mxu0 0.0
    %804 = vmatprep.subr.mxu0 0.0
    %805 = vmatpush1.msra.mxu0 0.0
    %806 = vmatprep.subr.mxu0 0.0
    %807 = vmatpush1.msra.mxu0 0.0
    %808 = vmatprep.subr.mxu0 0.0
    %809 = vmatpush1.msra.mxu0 0.0
    %810 = vmatprep.subr.mxu0 0.0
    %811 = vmatpush1.msra.mxu0 0.0
    %812 = vmatprep.subr.mxu0 0.0
    %813 = vmatpush1.msra.mxu0 0.0
    %814 = vmatprep.subr.mxu0 0.0
    %815 = vmatpush1.msra.mxu0 0.0
    %816 = vmatprep.subr.mxu0 0.0
    %817 = vmatpush1.msra.mxu0 0.0
    %818 = vmatprep.subr.mxu0 0.0
    %819 = vmatpush1.msra.mxu0 0.0
    %820 = vmatprep.subr.mxu0 0.0
    %821 = vmatpush1.msra.mxu0 0.0
    %822 = vmatprep.subr.mxu0 0.0
    %823 = vmatpush1.msra.mxu0 0.0
    %824 = vmatprep.subr.mxu0 0.0
    %825 = vmatpush1.msra.mxu0 0.0
    %826 = vmatprep.subr.mxu0 0.0
    %827 = vmatpush1.msra.mxu0 0.0
    %828 = vmatprep.mubr.f32.mxu0 0.0
    %829 = vmatmul.mubr.f32.gmra.mrb[0].mxu0 %v762
    %v830 = vpop.f32.mrb[0].mxu0
    %v831 = vadd.f32 0.0, %v830
    %v832 = vpop.f32.mrb[0].mxu0
    %833 = vdwg.mxu0
    %v834 = vadd.f32 %v758, %v831
    %v835 = vtanh.pop %v834
    %v836 = vmul.f32 %v835, 0.5
    %v837 = vadd.f32 %v836, 0.5
    %v838 = vmul.f32 %v837, %v746
    %840 = vrot.lane.b32.xlu0 %v835, 96
    %v841 = vpop.permute.xlu0 %840
    %v843 = vmul.f32 %v837, %v841
    %845 = vrot.lane.b32.xlu0 %v843, 16
    %v846 = vpop.permute.xlu0 %845
    %v848 = vadd.f32 %v838, %v846
    %v849 = vtanh.pop %v848
    %851 = vrot.lane.b32.xlu0 %v849, 32
    %v852 = vpop.permute.xlu0 %851
    %v854 = vmul.f32 %v837, %v852
    %v855 = vlaneseq
    %v856 = vshrl.u32 %v855, 7
    %v857 = vsub.s32 0, %v856
    %v858 = vrot.slane %v29, %v857
    %860 = vrot.lane.b32.xlu0 %v858, 48
    %v861 = vpop.permute.xlu0 %860
    %v863 = vmul.f32 %v854, %v861
    %865 = vrot.lane.b32.xlu0 %v863, 80
    %v866 = vpop.permute.xlu0 %865
    %vm868 = vcmask 123904
    %v869 = vsel %vm868, %v866, 0.0
    %870 = vadd.xlane.f32.xlu0 %v869
    %v871 = vpop.xlane.xlu0 %870
    %v872 = vadd.f32 %v871, %v858
    %874 = vrot.lane.b32.xlu0 %v872, 112
    %v875 = vpop.permute.xlu0 %874
    %vm877 = vcmask 1024
    %878 = vst.msk [vmem:[%s2] sm:$0x3] %vm877, %v875
    // Predicated region
    $region14: #{simple_model_forward.1} parent=1 // pred_check
      _
    $region15: #{simple_model_forward.1} parent=1 // pred_check_branch
      %880 = sbr.rel (0) target = $region17
    $region16: #{simple_model_forward.1} parent=1 // pred_region
      _
    $region17: #{simple_model_forward.1} parent=1 // pred_fallthru
      _
    // Predicated region
    $region18: #{simple_model_forward.1} parent=1 // pred_check
      _
    $region19: #{simple_model_forward.1} parent=1 // pred_check_branch
      %882 = sbr.rel (0) target = $region21
    $region20: #{simple_model_forward.1} parent=1 // pred_region
      _
    $region21: #{simple_model_forward.1} parent=1 // pred_fallthru
      _
    %883 = vsyncpa [#allocation3], 1

</llo_original>
